<compile_context>
chip_gen: v5e
topology: v5e:2x2
jax: 0.10.0
libtpu: 0.0.40
codegen_flags: <defaults>
</compile_context>

<pallas_src>
import functools
import math

import jax
import jax.numpy as jnp
from jax.experimental import pallas as pl
from jax.experimental.pallas import tpu as pltpu

_LANE = 128
_VMEM_LIMIT_BYTES = 44 * 1024 * 1024      # safe on v7x (64 MiB phys), helps v5e (16 MiB default)
_W_RESIDENT_BYTES = 10 * 1024 * 1024      # full fused weight kept resident below this
_FAST_PATH_VMEM_BYTES = 28 * 1024 * 1024  # total double-buffered footprint cap for fast path


def _round_up(x, m):
    return ((x + m - 1) // m) * m


def _sublane(dtype):
    # dtype-aware sublane packing: f32 -> 8, bf16 -> 16, int8/fp8 -> 32.
    return 8 * (4 // jnp.dtype(dtype).itemsize)


def _weight_layout(k, n_out, dtype):
    """Single source of truth for K/N padding and base K/N tile sizes."""
    itemsize = jnp.dtype(dtype).itemsize
    tk_cap = 1024 if itemsize <= 2 else 512
    tn_cap = 512
    tk = min(tk_cap, _round_up(k, _LANE))
    tn = min(tn_cap, _round_up(n_out, _LANE))
    k_pad = _round_up(k, tk)
    n_pad = _round_up(n_out, tn)
    assert k_pad % tk == 0 and n_pad % tn == 0
    return k_pad, n_pad, tk, tn


# ----------------------------------------------------------------------------
# Kernels
# ----------------------------------------------------------------------------
def _dimextend_fast_kernel(x_ref, w_ref, o_ref):
    # Weight-resident path: full K in one dot, f32 MXU accumulation, direct store.
    o_ref[...] = jnp.dot(
        x_ref[...], w_ref[...], preferred_element_type=jnp.float32
    ).astype(o_ref.dtype)


def _dimextend_acc_kernel(x_ref, w_ref, o_ref, acc_ref):
    # General (M, N, K)-tiled path with f32 VMEM accumulator.
    @pl.when(pl.program_id(2) == 0)
    def _init():
        acc_ref[...] = jnp.zeros_like(acc_ref)

    acc_ref[...] += jnp.dot(
        x_ref[...], w_ref[...], preferred_element_type=jnp.float32
    )

    @pl.when(pl.program_id(2) == pl.num_programs(2) - 1)
    def _finalize():
        o_ref[...] = acc_ref[...].astype(o_ref.dtype)


# ----------------------------------------------------------------------------
# Init-time weight fusion (base + adapter), transpose to [K, N], zero-pad.
# Zero K-padding is numerically inert; N-padding is sliced off in the wrapper.
# Optionally casts the weight to a narrower MXU dtype (e.g. bf16) once, here.
# ----------------------------------------------------------------------------
def prepare_dimextend_weight(w_base, w_adapter, compute_dtype=None):
    """w_base: [N_base, K], w_adapter: [n_ext, K] -> (w_fused [K_pad, N_pad], n_out)."""
    n_base, k = w_base.shape
    n_ext, k2 = w_adapter.shape
    assert k == k2, (k, k2)
    n_out = n_base + n_ext

    dtype = jnp.dtype(compute_dtype) if compute_dtype is not None else w_base.dtype
    k_pad, n_pad, _, _ = _weight_layout(k, n_out, dtype)

    w_cat = jnp.concatenate([w_base, w_adapter], axis=0).astype(dtype)  # [n_out, K]
    w_t = jnp.transpose(w_cat)                                          # [K, n_out]
    w_fused = jnp.pad(w_t, ((0, k_pad - k), (0, n_pad - n_out)))        # zero pad
    return w_fused, n_out


# ----------------------------------------------------------------------------
# Forward wrapper.
# ----------------------------------------------------------------------------
@functools.partial(jax.jit, static_argnames=("n_out",))
def linear_dim_extend(x, w_fused, n_out):
    """x: [B, S, K]; w_fused: [K_pad, N_pad] from prepare_dimextend_weight."""
    out_dtype = x.dtype
    b, s, k = x.shape
    m = b * s

    compute_dtype = w_fused.dtype
    itemsize = jnp.dtype(compute_dtype).itemsize
    out_itemsize = jnp.dtype(out_dtype).itemsize

    k_pad, n_pad, tk, tn = _weight_layout(k, n_out, compute_dtype)
    assert w_fused.shape == (k_pad, n_pad), (
        "w_fused was not produced by prepare_dimextend_weight under the current "
        "tile policy", w_fused.shape, (k_pad, n_pad))

    tm = min(512, _round_up(m, _sublane(compute_dtype)))
    m_pad = _round_up(m, tm)
    grid_m = m_pad // tm

    # TODO(synk): for tiny problems (like the demo shapes) a plain XLA dot beats
    # any kernel launch; gate the Pallas dispatch on problem size in production.
    x2d = x.reshape(m, k)
    if compute_dtype != x.dtype:
        x2d = x2d.astype(compute_dtype)
    if m_pad != m or k_pad != k:            # skip the pad pass when it's a no-op
        x2d = jnp.pad(x2d, ((0, m_pad - m), (0, k_pad - k)))

    w_bytes = k_pad * n_pad * itemsize
    fast_vmem = (
        2 * tm * k_pad * itemsize           # x double buffer
        + 2 * w_bytes                       # W buffers (fetched once; budgeted x2)
        + 2 * tm * n_pad * out_itemsize     # out double buffer
    )
    use_fast = w_bytes <= _W_RESIDENT_BYTES and fast_vmem <= _FAST_PATH_VMEM_BYTES

    if use_fast:
        # Weight-resident path: W's block index is constant (per N block), so it
        # is DMA'd into VMEM exactly once for the whole grid (1x HBM traffic).
        tn_f = n_pad
        if grid_m == 1 and n_pad >= 2 * _LANE:
            # Decode-sized M: split N so the dual-TC megacore (v7x) has >= 2 blocks.
            tn_f = n_pad // 2 if (n_pad // 2) % _LANE == 0 else _LANE
        grid = (grid_m, n_pad // tn_f)
        bytes_accessed = (
            m_pad * k_pad * itemsize + w_bytes + m_pad * n_pad * out_itemsize
        )
        out = pl.pallas_call(
            _dimextend_fast_kernel,
            out_shape=jax.ShapeDtypeStruct((m_pad, n_pad), out_dtype),
            grid_spec=pltpu.PrefetchScalarGridSpec(
                num_scalar_prefetch=0,
                grid=grid,
                in_specs=[
                    pl.BlockSpec((tm, k_pad), lambda i, j: (i, 0)),
                    pl.BlockSpec((k_pad, tn_f), lambda i, j: (0, j)),
                ],
                out_specs=pl.BlockSpec((tm, tn_f), lambda i, j: (i, j)),
            ),
            compiler_params=pltpu.CompilerParams(
                dimension_semantics=("parallel", "parallel"),
                vmem_limit_bytes=_VMEM_LIMIT_BYTES,
            ),
            cost_estimate=pl.CostEstimate(
                flops=2 * m_pad * k_pad * n_pad,
                transcendentals=0,
                bytes_accessed=bytes_accessed,
            ),
        )(x2d, w_fused)
    else:
        # General (M, N, K)-tiled path with f32 accumulator.
        grid_n = n_pad // tn
        if grid_m == 1 and grid_n == 1 and n_pad >= 2 * _LANE:
            tn = n_pad // 2 if (n_pad // 2) % _LANE == 0 else _LANE
            grid_n = n_pad // tn
        grid_k = k_pad // tk
        grid = (grid_m, grid_n, grid_k)
        bytes_accessed = (
            m_pad * k_pad * itemsize * grid_n       # x re-read per N block
            + k_pad * n_pad * itemsize * grid_m     # W re-read per M block
            + m_pad * n_pad * out_itemsize
        )
        out = pl.pallas_call(
            _dimextend_acc_kernel,
            out_shape=jax.ShapeDtypeStruct((m_pad, n_pad), out_dtype),
            grid_spec=pltpu.PrefetchScalarGridSpec(
                num_scalar_prefetch=0,
                grid=grid,
                in_specs=[
                    pl.BlockSpec((tm, tk), lambda i, j, kk: (i, kk)),
                    pl.BlockSpec((tk, tn), lambda i, j, kk: (kk, j)),
                ],
                out_specs=pl.BlockSpec((tm, tn), lambda i, j, kk: (i, j)),
                scratch_shapes=[pltpu.VMEM((tm, tn), jnp.float32)],
            ),
            compiler_params=pltpu.CompilerParams(
                dimension_semantics=("parallel", "parallel", "arbitrary"),
                vmem_limit_bytes=_VMEM_LIMIT_BYTES,
            ),
            cost_estimate=pl.CostEstimate(
                flops=2 * m_pad * k_pad * n_pad,
                transcendentals=0,
                bytes_accessed=bytes_accessed,
            ),
        )(x2d, w_fused)

    if m_pad != m or n_pad != n_out:        # skip the slice pass when it's a no-op
        out = out[:m, :n_out]
    return out.reshape(b, s, n_out)


def _reference(x, w_base, w_adapter):
    y1 = jnp.einsum("bsk,nk->bsn", x, w_base)
    y2 = jnp.einsum("bsk,nk->bsn", x, w_adapter)
    return jnp.concatenate([y1, y2], axis=-1)


if __name__ == "__main__":
    # Shapes implied by the module: base nn.Linear(in_features -> out_features,
    # bias=False), adapter weight [n, in_features], input [batch, seq, in_features].
    # TODO(synk): the hidden_dim != None branch (StateMlp-generated adapter weight)
    # is a separate module that produces the weight; it is not implemented here.
    B, S = 2, 8
    in_features = 32
    out_features = 64
    n_ext = 8  # number of extended output dims

    key = jax.random.PRNGKey(0)
    k_x, k_wb, k_wa = jax.random.split(key, 3)

    dtype = jnp.float32
    x = jax.random.normal(k_x, (B, S, in_features), dtype=dtype)

    # Base nn.Linear default init: kaiming_uniform(a=sqrt(5)) -> U(-1/sqrt(K), 1/sqrt(K))
    bound = 1.0 / math.sqrt(in_features)
    w_base = jax.random.uniform(
        k_wb, (out_features, in_features), dtype=dtype, minval=-bound, maxval=bound
    )
    # Adapter weight for target_name='x_proj_B' -> 'random' init (same kaiming-uniform law).
    # (target_name='x_proj_C' would be all zeros.)
    w_adapter = jax.random.uniform(
        k_wa, (n_ext, in_features), dtype=dtype, minval=-bound, maxval=bound
    )

    y_ref = _reference(x, w_base, w_adapter)

    # ---- f32 compute path (exact module semantics) ----
    w_fused, n_out = prepare_dimextend_weight(w_base, w_adapter)
    w_fused = jax.block_until_ready(w_fused)
    y = jax.block_until_ready(linear_dim_extend(x, w_fused, n_out))
    assert y.shape == (B, S, out_features + n_ext), y.shape
    assert jnp.allclose(y, y_ref, atol=1e-5, rtol=1e-5), "f32 mismatch vs reference"

    # ---- bf16 MXU-operand path (f32 accumulation, output in x's dtype) ----
    w_fused_bf16, _ = prepare_dimextend_weight(
        w_base, w_adapter, compute_dtype=jnp.bfloat16
    )
    w_fused_bf16 = jax.block_until_ready(w_fused_bf16)
    y_bf16 = jax.block_until_ready(linear_dim_extend(x, w_fused_bf16, n_out))
    assert y_bf16.shape == (B, S, out_features + n_ext), y_bf16.shape
    assert jnp.allclose(y_bf16, y_ref, atol=1e-1, rtol=5e-2), "bf16 mismatch vs reference"

    print("KERNEL_OK")
</pallas_src>

<mosaic_0001>
module attributes {stable_mosaic.version = 11 : i64} {
  func.func @_dimextend_fast_kernel(%arg0: i32, %arg1: i32, %arg2: memref<16x128xf32, #tpu.memory_space<vmem>>, %arg3: memref<128x128xf32, #tpu.memory_space<vmem>>, %arg4: memref<16x128xf32, #tpu.memory_space<vmem>>) attributes {dimension_semantics = [#tpu.dimension_semantics<parallel>, #tpu.dimension_semantics<parallel>], iteration_bounds = array<i64: 1, 1>, scalar_prefetch = 0 : i64, scratch_operands = 0 : i64, tpu.core_type = #tpu.core_type<tc>, window_params = [{transform_indices = @transform_0, window_bounds = array<i64: 16, 128>}, {transform_indices = @transform_1, window_bounds = array<i64: 128, 128>}, {transform_indices = @transform_2, window_bounds = array<i64: 16, 128>}]} {
    %c0 = arith.constant 0 : index
    %c0_0 = arith.constant 0 : index
    %0 = vector.load %arg2[%c0, %c0_0] : memref<16x128xf32, #tpu.memory_space<vmem>>, vector<16x128xf32>
    %c0_1 = arith.constant 0 : index
    %c0_2 = arith.constant 0 : index
    %1 = vector.load %arg3[%c0_1, %c0_2] : memref<128x128xf32, #tpu.memory_space<vmem>>, vector<128x128xf32>
    %cst = arith.constant dense<0.000000e+00> : vector<16x128xf32>
    %2 = tpu.matmul %0, %1, %cst {dimension_numbers = #tpu.dot_dimension_numbers<[1], [0], [0], [1], [0, 0, 1, 1], [], []>} : vector<16x128xf32>, vector<128x128xf32>, vector<16x128xf32> -> vector<16x128xf32>
    %c0_3 = arith.constant 0 : index
    %c0_4 = arith.constant 0 : index
    %3 = vector.load %arg4[%c0_3, %c0_4] : memref<16x128xf32, #tpu.memory_space<vmem>>, vector<16x128xf32>
    tpu.vector_store %arg4[%c0_3, %c0_4], %2 {strides = array<i32>} : memref<16x128xf32, #tpu.memory_space<vmem>>, vector<16x128xf32>,
    return
  }
  func.func @transform_0(%arg0: i32, %arg1: i32) -> (i32, i32) {
    %c0_i32 = arith.constant 0 : i32
    %c0_i32_0 = arith.constant 0 : i32
    return %arg0, %c0_i32 : i32, i32
  }
  func.func @transform_1(%arg0: i32, %arg1: i32) -> (i32, i32) {
    %c0_i32 = arith.constant 0 : i32
    %c0_i32_0 = arith.constant 0 : i32
    return %c0_i32, %arg1 : i32, i32
  }
  func.func @transform_2(%arg0: i32, %arg1: i32) -> (i32, i32) {
    %c0_i32 = arith.constant 0 : i32
    return %arg0, %arg1 : i32, i32
  }
}

</mosaic_0001>

<llo_original>
// kernel: linear_dim_extend.1
$region0: #{linear_dim_extend.1}
  #allocation0 [shape = 'u32[]', space=smem, size = 0x4, offset = 0x4, fixed_abs, tag = 'smem constant byte address 0x4 - core index']
  #allocation1 [shape = 'u32[72,128]{1,0:T(1,128)}', space=vmem, size = 0x9000, scoped, tag = 'internal scratch']
  %s0 = inlined_call_operand.vmem [shape: f32[16,128], index: 0, kind: input, shape index: {}]
  %s1 = inlined_call_operand.hbm [shape: f32[128,128], index: 1, kind: input, shape index: {}]
  %s2 = inlined_call_operand.vmem [shape: f32[16,128], index: 2, kind: output, shape index: {}]
  %s3 = sld [smem:[#allocation0]]
  $region22: #{linear_dim_extend.1} parent=0
    _
  %s5 = ssub.s32 1, %s3
  %s6 = scalar_select 0, %s5, %s3
  $region1: #{linear_dim_extend.1} parent=0
    #allocation2 [shape = 'u8[65536]{0}', space=vmem, size = 0x10000, scoped, tag = 'input window, operand 1, single buffered']
    #allocation3 [shape = 's32[1]{0}', space=sflag, size = 0x4, scoped, tag = 'scoped memory for linear_dim_extend.1']
    %7 = vsyncpa [#allocation3], 0
    // Predicated region
    $region2: #{linear_dim_extend.1} parent=1 // pred_check
      _
    $region3: #{linear_dim_extend.1} parent=1 // pred_check_branch
      %9 = sbr.rel (0) target = $region5
    $region4: #{linear_dim_extend.1} parent=1 // pred_region
      _
    $region5: #{linear_dim_extend.1} parent=1 // pred_fallthru
      _
    // Predicated region
    $region6: #{linear_dim_extend.1} parent=1 // pred_check
      _
    $region7: #{linear_dim_extend.1} parent=1 // pred_check_branch
      %11 = sbr.rel (0) target = $region9
    $region8: #{linear_dim_extend.1} parent=1 // pred_region
      %13 = vsyncadd [#allocation3], 0
      %s14 = sshll.u32 %s1, 4
      %s15 = int_to_ptr.hbm [resolvable:$true] %s14
      %s16 = sshll.u32 [#allocation2], 4
      %s17 = int_to_ptr.vmem [resolvable:$true] %s16
      %22 = dma.hbm_to_vmem [thread:$0]  %s15, 2048, %s17, [#allocation3], 128, 128, 8
    $region9: #{linear_dim_extend.1} parent=1 // pred_fallthru
      _
    // Predicated region
    $region10: #{linear_dim_extend.1} parent=1 // pred_check
      _
    $region11: #{linear_dim_extend.1} parent=1 // pred_check_branch
      %24 = sbr.rel (0) target = $region13
    $region12: #{linear_dim_extend.1} parent=1 // pred_region
      %26 = dma.done [#allocation3], 2048
    $region13: #{linear_dim_extend.1} parent=1 // pred_fallthru
      _
    %v27 = vld [vmem:[%s0] sm:$0xff]
    %v28 = vld [vmem:[%s0 + $0x8] sm:$0xff]
    %v29 = vld [vmem:[#allocation2] sm:$0xff]
    %v30 = vld [vmem:[#allocation2 + $0x8] sm:$0xff]
    %v31 = vld [vmem:[#allocation2 + $0x10] sm:$0xff]
    %v32 = vld [vmem:[#allocation2 + $0x18] sm:$0xff]
    %v33 = vld [vmem:[#allocation2 + $0x20] sm:$0xff]
    %v34 = vld [vmem:[#allocation2 + $0x28] sm:$0xff]
    %v35 = vld [vmem:[#allocation2 + $0x30] sm:$0xff]
    %v36 = vld [vmem:[#allocation2 + $0x38] sm:$0xff]
    %v37 = vld [vmem:[#allocation2 + $0x40] sm:$0xff]
    %v38 = vld [vmem:[#allocation2 + $0x48] sm:$0xff]
    %v39 = vld [vmem:[#allocation2 + $0x50] sm:$0xff]
    %v40 = vld [vmem:[#allocation2 + $0x58] sm:$0xff]
    %v41 = vld [vmem:[#allocation2 + $0x60] sm:$0xff]
    %v42 = vld [vmem:[#allocation2 + $0x68] sm:$0xff]
    %v43 = vld [vmem:[#allocation2 + $0x70] sm:$0xff]
    %v44 = vld [vmem:[#allocation2 + $0x78] sm:$0xff]
    %45 = vmatpush.msra.mxu0 %v44
    %46 = vmatpush.msra.mxu0 %v43
    %47 = vmatpush.msra.mxu0 %v42
    %48 = vmatpush.msra.mxu0 %v41
    %49 = vmatpush.msra.mxu0 %v40
    %50 = vmatpush.msra.mxu0 %v39
    %51 = vmatpush.msra.mxu0 %v38
    %52 = vmatpush.msra.mxu0 %v37
    %53 = vmatpush.msra.mxu0 %v36
    %54 = vmatpush.msra.mxu0 %v35
    %55 = vmatpush.msra.mxu0 %v34
    %56 = vmatpush.msra.mxu0 %v33
    %57 = vmatpush.msra.mxu0 %v32
    %58 = vmatpush.msra.mxu0 %v31
    %59 = vmatpush.msra.mxu0 %v30
    %60 = vmatpush.msra.mxu0 %v29
    %61 = vmatmul.f32.gmra.mxu0 %v27
    %v62 = vpop.f32.mrf.mxu0
    %v63 = vadd.f32 0.0, %v62
    %64 = vmatmul.f32.gmra.mxu0 %v28
    %v65 = vpop.f32.mrf.mxu0
    %v66 = vadd.f32 0.0, %v65
    %67 = vdwg.mxu0
    %68 = vst [vmem:[%s2] sm:$0xff] %v63
    %69 = vst [vmem:[%s2 + $0x8] sm:$0xff] %v66
    // Predicated region
    $region14: #{linear_dim_extend.1} parent=1 // pred_check
      _
    $region15: #{linear_dim_extend.1} parent=1 // pred_check_branch
      %71 = sbr.rel (0) target = $region17
    $region16: #{linear_dim_extend.1} parent=1 // pred_region
      _
    $region17: #{linear_dim_extend.1} parent=1 // pred_fallthru
      _
    // Predicated region
    $region18: #{linear_dim_extend.1} parent=1 // pred_check
      _
    $region19: #{linear_dim_extend.1} parent=1 // pred_check_branch
      %73 = sbr.rel (0) target = $region21
    $region20: #{linear_dim_extend.1} parent=1 // pred_region
      _
    $region21: #{linear_dim_extend.1} parent=1 // pred_fallthru
      _
    %74 = vsyncpa [#allocation3], 1

</llo_original>
